<compile_context>
chip_gen: v7x
topology: tpu7x:2x2x1
jax: 0.10.0
libtpu: 0.0.40
codegen_flags: <defaults>
</compile_context>

<pallas_src>
import functools

import jax
import jax.numpy as jnp
from jax.experimental import pallas as pl
from jax.experimental.pallas import tpu as pltpu

H_PAD = 128  # lane-dense padded hidden dim (keep at 128; see header)


def _round_up(x: int, m: int) -> int:
    return (x + m - 1) // m * m


# ------------------------------------------------------------------ params ---
def hidden1_prepare_params(w1, b1, w2, b2, *, weight_dtype=jnp.bfloat16):
    """One-time (init-time) padding + cast of the fc1/fc2 parameters.

    w1: (3*L^2, hidden) stored (in, out);  b1: (hidden,)
    w2: (hidden, 2*L^2);                   b2: (2*L^2,)
    Hidden dim is zero-padded to 128 so h / W1-N / W2-K are lane-dense; padding
    is exact zeros so results are unchanged.  Call once; pass the result into
    hidden1_forward (do NOT rebuild per call — that doubles HBM traffic at
    small batch).
    """
    in_dim, hidden = w1.shape
    out_dim = w2.shape[1]
    h_pad = max(H_PAD, _round_up(hidden, 128))
    w1p = jnp.zeros((in_dim, h_pad), weight_dtype).at[:, :hidden].set(
        w1.astype(weight_dtype))
    b1p = jnp.zeros((1, h_pad), jnp.float32).at[:, :hidden].set(
        b1.astype(jnp.float32))
    w2p = jnp.zeros((h_pad, out_dim), weight_dtype).at[:hidden, :].set(
        w2.astype(weight_dtype))
    b2p = b2.reshape(1, out_dim).astype(jnp.float32)
    return w1p, b1p, w2p, b2p


# ------------------------------------------------------------------ kernel ---
def hidden1_kernel(x_ref, w1_ref, b1_ref, w2_ref, b2_ref, o_ref):
    # Cast the activation tile to the weight/MXU dtype here (free VPU filler);
    # x stays f32 in HBM so no wrapper-side bf16 copy is ever materialized.
    x = x_ref[...].astype(w1_ref.dtype)

    # fc1 + ReLU (MXU matmul, f32 accumulation; biases are f32)
    h = jnp.dot(x, w1_ref[...], preferred_element_type=jnp.float32)
    h = jnp.maximum(h + b1_ref[...], 0.0)              # (tb, 128), lane-dense

    # fc2 + ReLU
    y = jnp.dot(h.astype(w2_ref.dtype), w2_ref[...],
                preferred_element_type=jnp.float32)
    y = jnp.maximum(y + b2_ref[...], 0.0)              # (tb, 2*L^2)

    o_ref[...] = y.astype(o_ref.dtype)


# ----------------------------------------------------------------- tiling ---
def _device_kind() -> str:
    try:
        return jax.devices()[0].device_kind.lower()
    except Exception:
        return ""


def _tile_config(streamed_bf16: bool):
    """Generation-aware batch tile + VMEM limit."""
    kind = _device_kind()
    is_v7 = "v7" in kind
    if is_v7:
        # 64 MiB VMEM per TC: keep the double-buffered x+out tiles well under budget.
        block_b = 2048
        vmem_limit = 48 * 1024 * 1024
    else:
        # v5e/v6e: 128 MiB VMEM; bigger tiles amortize the ~0.35 us/step overhead.
        block_b = 4096 if streamed_bf16 else 2048
        vmem_limit = 64 * 1024 * 1024
    return block_b, vmem_limit, is_v7


# ---------------------------------------------------------------- forward ---
def hidden1_forward(x_nchw, w1p, b1p, w2p, b2p, length, *,
                    out_dtype=jnp.float32,
                    block_b=None,
                    reshape_output=False):
    """x_nchw: (B, 3, L, L).  w1p/b1p/w2p/b2p from hidden1_prepare_params().

    Returns the lane-dense (B, 2*L*L) array by default (preferred for on-device
    composition); set reshape_output=True to get the PyTorch-shaped (B*L^2, 2)
    at the true host/API boundary.
    """
    B = x_nchw.shape[0]
    in_dim = 3 * length * length
    out_dim = 2 * length * length
    h_pad = w1p.shape[1]

    # nn.Flatten on NCHW -> (B, C*H*W); contiguous reshape, no cast (cast is in-kernel).
    x2d = x_nchw.reshape(B, in_dim)

    streamed_bf16 = (x2d.dtype == jnp.dtype(jnp.bfloat16)
                     or jnp.dtype(out_dtype) == jnp.dtype(jnp.bfloat16))
    sub = 16 if streamed_bf16 else 8  # minimum sublane multiple of streamed tiles
    auto_block_b, vmem_limit, is_v7 = _tile_config(streamed_bf16)
    if block_b is None:
        block_b = auto_block_b

    # --- batch tiling ---
    tb = _round_up(min(block_b, _round_up(B, sub)), sub)
    b_pad = _round_up(B, tb)
    # v7x has 2 TensorCores: ensure the "parallel" batch axis has >=2 steps
    # whenever there are enough rows, so megacore sharding is not a no-op.
    if is_v7 and b_pad // tb == 1 and b_pad >= 2 * sub:
        tb = _round_up((b_pad + 1) // 2, sub)
        b_pad = _round_up(B, tb)
    grid = (b_pad // tb,)

    if b_pad != B:  # exact-zero row padding; padded rows are sliced off below
        x2d = jnp.zeros((b_pad, in_dim), x2d.dtype).at[:B].set(x2d)

    wbytes = jnp.dtype(w1p.dtype).itemsize
    cost = pl.CostEstimate(
        flops=2 * b_pad * (in_dim * h_pad + h_pad * out_dim),
        transcendentals=0,
        bytes_accessed=(x2d.size * x2d.dtype.itemsize
                        + (w1p.size + w2p.size) * wbytes
                        + (b1p.size + b2p.size) * 4
                        + b_pad * out_dim * jnp.dtype(out_dtype).itemsize),
    )

    y = pl.pallas_call(
        hidden1_kernel,
        out_shape=jax.ShapeDtypeStruct((b_pad, out_dim), out_dtype),
        grid=grid,
        in_specs=[
            # activations: streamed over the batch grid axis (f32 in HBM, cast in-kernel)
            pl.BlockSpec((tb, in_dim), lambda i: (i, 0)),
            # weights / biases: constant block index -> resident in VMEM across steps
            pl.BlockSpec((in_dim, h_pad), lambda i: (0, 0)),
            pl.BlockSpec((1, h_pad), lambda i: (0, 0)),
            pl.BlockSpec((h_pad, out_dim), lambda i: (0, 0)),
            pl.BlockSpec((1, out_dim), lambda i: (0, 0)),
        ],
        out_specs=pl.BlockSpec((tb, out_dim), lambda i: (i, 0)),
        compiler_params=pltpu.CompilerParams(
            dimension_semantics=("parallel",),
            vmem_limit_bytes=vmem_limit,
        ),
        cost_estimate=cost,
    )(x2d, w1p, b1p, w2p, b2p)

    y = y[:B]  # drop batch padding; stays lane-dense (B, 2*L*L)
    if not reshape_output:
        return y
    # Last-dim-2 reshape only at the true host/API boundary (2/128 lane-dense).
    return y.reshape(B * length * length, 2)


# ------------------------------------------------------------------- main ---
if __name__ == "__main__":
    # Small shapes consistent with the module: length=16, hidden_size=32, batch=2.
    B, L, H = 2, 16, 32
    in_dim = 3 * L * L   # 768
    out_dim = 2 * L * L  # 512

    key = jax.random.PRNGKey(0)
    kx, kw1, kb1, kw2, kb2 = jax.random.split(key, 5)

    x = jax.random.normal(kx, (B, 3, L, L), dtype=jnp.float32)
    # Deterministic parameter init (nn.Linear weights stored as (in, out)).
    w1 = jax.random.normal(kw1, (in_dim, H), dtype=jnp.float32) * 0.02
    b1 = jax.random.normal(kb1, (H,), dtype=jnp.float32) * 0.02
    w2 = jax.random.normal(kw2, (H, out_dim), dtype=jnp.float32) * 0.02
    b2 = jax.random.normal(kb2, (out_dim,), dtype=jnp.float32) * 0.02

    # Pure-JAX f32 reference of the same math (activation = ReLU).
    ref2d = jnp.maximum(x.reshape(B, in_dim) @ w1 + b1, 0.0)
    ref2d = jnp.maximum(ref2d @ w2 + b2, 0.0)
    ref = ref2d.reshape(B * L * L, 2)

    # ---- default path: bf16 weights (prepared ONCE at init), f32 x, f32 out ----
    # NOTE: bf16 weights are a documented numerics change vs the f32 PyTorch
    # reference (f32 accumulation + f32 biases kept); use weight_dtype=f32 below
    # for a bit-faithful path.
    params_bf16 = hidden1_prepare_params(w1, b1, w2, b2)
    fwd = jax.jit(functools.partial(hidden1_forward, length=L))
    out = jax.block_until_ready(fwd(x, *params_bf16))           # lane-dense (B, 2*L*L)
    assert out.shape == (B, out_dim)
    assert jnp.allclose(out, ref2d, atol=5e-2, rtol=5e-2)

    # PyTorch-shaped output only at the API boundary.
    fwd_api = jax.jit(functools.partial(hidden1_forward, length=L,
                                        reshape_output=True))
    out_api = jax.block_until_ready(fwd_api(x, *params_bf16))
    assert out_api.shape == (B * L * L, 2)
    assert jnp.allclose(out_api, ref, atol=5e-2, rtol=5e-2)

    # ---- f32-weight path: bit-faithful to the reference math ----
    params_f32 = hidden1_prepare_params(w1, b1, w2, b2, weight_dtype=jnp.float32)
    fwd_f32 = jax.jit(functools.partial(hidden1_forward, length=L,
                                        reshape_output=True))
    out_f32 = jax.block_until_ready(fwd_f32(x, *params_f32))
    assert out_f32.shape == (B * L * L, 2)
    assert jnp.allclose(out_f32, ref, atol=1e-5, rtol=1e-5)

    # ---- bf16-output option (for downstream bf16 consumers) ----
    fwd_bf16_out = jax.jit(functools.partial(hidden1_forward, length=L,
                                             out_dtype=jnp.bfloat16))
    out_b = jax.block_until_ready(fwd_bf16_out(x, *params_bf16))
    assert out_b.shape == (B, out_dim) and out_b.dtype == jnp.bfloat16
    assert jnp.allclose(out_b.astype(jnp.float32), ref2d, atol=5e-2, rtol=5e-2)

    print("KERNEL_OK")
</pallas_src>

<mosaic_0001>
module attributes {stable_mosaic.version = 11 : i64} {
  func.func @hidden1_kernel(%arg0: i32, %arg1: memref<8x768xf32, #tpu.memory_space<vmem>>, %arg2: memref<768x128xbf16, #tpu.memory_space<vmem>>, %arg3: memref<1x128xf32, #tpu.memory_space<vmem>>, %arg4: memref<128x512xbf16, #tpu.memory_space<vmem>>, %arg5: memref<1x512xf32, #tpu.memory_space<vmem>>, %arg6: memref<8x512xf32, #tpu.memory_space<vmem>>) attributes {dimension_semantics = [#tpu.dimension_semantics<parallel>], iteration_bounds = array<i64: 1>, scalar_prefetch = 0 : i64, scratch_operands = 0 : i64, tpu.core_type = #tpu.core_type<tc>, window_params = [{transform_indices = @transform_0, window_bounds = array<i64: 8, 768>}, {pipeline_mode = #tpu.pipeline_mode<synchronous>, transform_indices = @transform_1, window_bounds = array<i64: 768, 128>}, {pipeline_mode = #tpu.pipeline_mode<synchronous>, transform_indices = @transform_2, window_bounds = array<i64: 1, 128>}, {pipeline_mode = #tpu.pipeline_mode<synchronous>, transform_indices = @transform_3, window_bounds = array<i64: 128, 512>}, {pipeline_mode = #tpu.pipeline_mode<synchronous>, transform_indices = @transform_4, window_bounds = array<i64: 1, 512>}, {transform_indices = @transform_5, window_bounds = array<i64: 8, 512>}]} {
    %c0 = arith.constant 0 : index
    %c0_0 = arith.constant 0 : index
    %0 = vector.load %arg1[%c0, %c0_0] : memref<8x768xf32, #tpu.memory_space<vmem>>, vector<8x768xf32>
    %1 = arith.truncf %0 : vector<8x768xf32> to vector<8x768xbf16>
    %c0_1 = arith.constant 0 : index
    %c0_2 = arith.constant 0 : index
    %2 = vector.load %arg2[%c0_1, %c0_2] : memref<768x128xbf16, #tpu.memory_space<vmem>>, vector<768x128xbf16>
    %cst = arith.constant dense<0.000000e+00> : vector<8x128xf32>
    %3 = tpu.matmul %1, %2, %cst {dimension_numbers = #tpu.dot_dimension_numbers<[1], [0], [0], [1], [0, 0, 1, 1], [], []>} : vector<8x768xbf16>, vector<768x128xbf16>, vector<8x128xf32> -> vector<8x128xf32>
    %c0_3 = arith.constant 0 : index
    %c0_4 = arith.constant 0 : index
    %4 = vector.load %arg3[%c0_3, %c0_4] : memref<1x128xf32, #tpu.memory_space<vmem>>, vector<1x128xf32>
    %5 = vector.broadcast %4 : vector<1x128xf32> to vector<8x128xf32>
    %6 = arith.addf %3, %5 : vector<8x128xf32>
    %cst_5 = arith.constant 0.000000e+00 : f32
    %7 = vector.broadcast %cst_5 : f32 to vector<8x128xf32>
    %8 = arith.maximumf %6, %7 : vector<8x128xf32>
    %9 = arith.truncf %8 : vector<8x128xf32> to vector<8x128xbf16>
    %c0_6 = arith.constant 0 : index
    %c0_7 = arith.constant 0 : index
    %10 = vector.load %arg4[%c0_6, %c0_7] : memref<128x512xbf16, #tpu.memory_space<vmem>>, vector<128x512xbf16>
    %cst_8 = arith.constant dense<0.000000e+00> : vector<8x512xf32>
    %11 = tpu.matmul %9, %10, %cst_8 {dimension_numbers = #tpu.dot_dimension_numbers<[1], [0], [0], [1], [0, 0, 1, 1], [], []>} : vector<8x128xbf16>, vector<128x512xbf16>, vector<8x512xf32> -> vector<8x512xf32>
    %c0_9 = arith.constant 0 : index
    %c0_10 = arith.constant 0 : index
    %12 = vector.load %arg5[%c0_9, %c0_10] : memref<1x512xf32, #tpu.memory_space<vmem>>, vector<1x512xf32>
    %13 = vector.broadcast %12 : vector<1x512xf32> to vector<8x512xf32>
    %14 = arith.addf %11, %13 : vector<8x512xf32>
    %cst_11 = arith.constant 0.000000e+00 : f32
    %15 = vector.broadcast %cst_11 : f32 to vector<8x512xf32>
    %16 = arith.maximumf %14, %15 : vector<8x512xf32>
    %c0_12 = arith.constant 0 : index
    %c0_13 = arith.constant 0 : index
    %17 = vector.load %arg6[%c0_12, %c0_13] : memref<8x512xf32, #tpu.memory_space<vmem>>, vector<8x512xf32>
    tpu.vector_store %arg6[%c0_12, %c0_13], %16 {strides = array<i32>} : memref<8x512xf32, #tpu.memory_space<vmem>>, vector<8x512xf32>,
    return
  }
  func.func @transform_0(%arg0: i32) -> (i32, i32) {
    %c0_i32 = arith.constant 0 : i32
    %c0_i32_0 = arith.constant 0 : i32
    return %arg0, %c0_i32 : i32, i32
  }
  func.func @transform_1(%arg0: i32) -> (i32, i32) {
    %c0_i32 = arith.constant 0 : i32
    %c0_i32_0 = arith.constant 0 : i32
    %c0_i32_1 = arith.constant 0 : i32
    return %c0_i32, %c0_i32_0 : i32, i32
  }
  func.func @transform_2(%arg0: i32) -> (i32, i32) {
    %c0_i32 = arith.constant 0 : i32
    %c0_i32_0 = arith.constant 0 : i32
    %c0_i32_1 = arith.constant 0 : i32
    return %c0_i32, %c0_i32_0 : i32, i32
  }
  func.func @transform_3(%arg0: i32) -> (i32, i32) {
    %c0_i32 = arith.constant 0 : i32
    %c0_i32_0 = arith.constant 0 : i32
    %c0_i32_1 = arith.constant 0 : i32
    return %c0_i32, %c0_i32_0 : i32, i32
  }
  func.func @transform_4(%arg0: i32) -> (i32, i32) {
    %c0_i32 = arith.constant 0 : i32
    %c0_i32_0 = arith.constant 0 : i32
    %c0_i32_1 = arith.constant 0 : i32
    return %c0_i32, %c0_i32_0 : i32, i32
  }
  func.func @transform_5(%arg0: i32) -> (i32, i32) {
    %c0_i32 = arith.constant 0 : i32
    %c0_i32_0 = arith.constant 0 : i32
    return %arg0, %c0_i32 : i32, i32
  }
}

</mosaic_0001>

<llo_original>
// kernel: hidden1_forward.1
$region0: #{hidden1_forward.1}
  #allocation0 [shape = 'u32[]', space=smem, size = 0x4, offset = 0x4, fixed_abs, tag = 'smem constant byte address 0x4 - core index']
  #allocation1 [shape = 'u32[144,128]{1,0:T(1,128)}', space=vmem, size = 0x12000, scoped, tag = 'internal scratch']
  %s0 = inlined_call_operand.hbm [shape: f32[8,768], index: 0, kind: input, shape index: {}]
  %s1 = inlined_call_operand.hbm [shape: bf16[768,128], index: 1, kind: input, shape index: {}]
  %s2 = inlined_call_operand.hbm [shape: f32[1,128], index: 2, kind: input, shape index: {}]
  %s3 = inlined_call_operand.hbm [shape: bf16[128,512], index: 3, kind: input, shape index: {}]
  %s4 = inlined_call_operand.hbm [shape: f32[1,512], index: 4, kind: input, shape index: {}]
  %s5 = inlined_call_operand.hbm [shape: f32[8,512], index: 5, kind: output, shape index: {}]
  %s6 = sld [smem:[#allocation0]]
  $region50: #{hidden1_forward.1} parent=0
    _
  %s8 = ssub.s32 1, %s6
  %s9 = scalar_select 0, %s8, %s6
  $region1: #{hidden1_forward.1} parent=0
    #allocation2 [shape = 'u8[24576]{0}', space=vmem, size = 0x6000, scoped, tag = 'input window, operand 0, single buffered']
    #allocation3 [shape = 's32[1]{0}', space=sflag, size = 0x4, scoped, tag = 'scoped memory for hidden1_forward.1']
    #allocation4 [shape = 's32[1]{0}', space=sflag, size = 0x4, scoped, tag = 'scoped memory for hidden1_forward.1']
    #allocation5 [shape = 'u8[196608]{0}', space=vmem, size = 0x30000, scoped, tag = 'input window, operand 1, single buffered']
    #allocation6 [shape = 's32[1]{0}', space=sflag, size = 0x4, scoped, tag = 'scoped memory for hidden1_forward.1']
    #allocation7 [shape = 'u8[512]{0}', space=vmem, size = 0x400, scoped, tag = 'input window, operand 2, single buffered']
    #allocation8 [shape = 'u8[131072]{0}', space=vmem, size = 0x20000, scoped, tag = 'input window, operand 3, single buffered']
    #allocation9 [shape = 's32[1]{0}', space=sflag, size = 0x4, scoped, tag = 'scoped memory for hidden1_forward.1']
    #allocation10 [shape = 'u8[2048]{0}', space=vmem, size = 0x800, scoped, tag = 'input window, operand 4, single buffered']
    #allocation11 [shape = 'u8[16384]{0}', space=vmem, size = 0x4000, scoped, tag = 'output window, operand 0, single buffered']
    %10 = vsyncpa [#allocation3], 0
    %11 = vsyncpa [#allocation6], 0
    %12 = vsyncpa [#allocation9], 0
    %13 = vsyncpa [#allocation4], 0
    // Predicated region
    $region2: #{hidden1_forward.1} parent=1 // pred_check
      _
    $region3: #{hidden1_forward.1} parent=1 // pred_check_branch
      %15 = sbr.rel (0) target = $region5
    $region4: #{hidden1_forward.1} parent=1 // pred_region
      %s17 = ssub.s32 768, 768
      %18 = vsyncadd [#allocation3], %s17
      %s20 = sshll.u32 [#allocation2], 4
      %s21 = int_to_ptr.vmem [resolvable:$true] %s20
      %23 = dma.hbm_to_vmem [thread:$0]  %s0, 768, %s21, [#allocation3]
    $region5: #{hidden1_forward.1} parent=1 // pred_fallthru
      _
    // Predicated region
    $region6: #{hidden1_forward.1} parent=1 // pred_check
      _
    $region7: #{hidden1_forward.1} parent=1 // pred_check_branch
      %25 = sbr.rel (0) target = $region9
    $region8: #{hidden1_forward.1} parent=1 // pred_region
      %s27 = ssub.s32 6144, 6144
      %28 = vsyncadd [#allocation6], %s27
      %s29 = sshll.u32 [#allocation5], 4
      %s30 = int_to_ptr.vmem [resolvable:$true] %s29
      %35 = dma.hbm_to_vmem [thread:$0]  %s1, 6144, %s30, [#allocation6], 64, 64, 4
    $region9: #{hidden1_forward.1} parent=1 // pred_fallthru
      _
    // Predicated region
    $region10: #{hidden1_forward.1} parent=1 // pred_check
      _
    $region11: #{hidden1_forward.1} parent=1 // pred_check_branch
      %37 = sbr.rel (0) target = $region13
    $region12: #{hidden1_forward.1} parent=1 // pred_region
      %s39 = ssub.s32 16, 16
      %40 = vsyncadd [#allocation6], %s39
      %s42 = sshll.u32 [#allocation7], 4
      %s43 = int_to_ptr.vmem [resolvable:$true] %s42
      %45 = dma.hbm_to_vmem [thread:$0]  %s2, 16, %s43, [#allocation6]
    $region13: #{hidden1_forward.1} parent=1 // pred_fallthru
      _
    // Predicated region
    $region14: #{hidden1_forward.1} parent=1 // pred_check
      _
    $region15: #{hidden1_forward.1} parent=1 // pred_check_branch
      %47 = sbr.rel (0) target = $region17
    $region16: #{hidden1_forward.1} parent=1 // pred_region
      %s49 = ssub.s32 4096, 4096
      %50 = vsyncadd [#allocation9], %s49
      %s51 = sshll.u32 [#allocation8], 4
      %s52 = int_to_ptr.vmem [resolvable:$true] %s51
      %57 = dma.hbm_to_vmem [thread:$0]  %s3, 4096, %s52, [#allocation9], 256, 256, 16
    $region17: #{hidden1_forward.1} parent=1 // pred_fallthru
      _
    // Predicated region
    $region18: #{hidden1_forward.1} parent=1 // pred_check
      _
    $region19: #{hidden1_forward.1} parent=1 // pred_check_branch
      %59 = sbr.rel (0) target = $region21
    $region20: #{hidden1_forward.1} parent=1 // pred_region
      %s61 = ssub.s32 64, 64
      %62 = vsyncadd [#allocation9], %s61
      %s64 = sshll.u32 [#allocation10], 4
      %s65 = int_to_ptr.vmem [resolvable:$true] %s64
      %67 = dma.hbm_to_vmem [thread:$0]  %s4, 64, %s65, [#allocation9]
    $region21: #{hidden1_forward.1} parent=1 // pred_fallthru
      _
    // Predicated region
    $region22: #{hidden1_forward.1} parent=1 // pred_check
      _
    $region23: #{hidden1_forward.1} parent=1 // pred_check_branch
      %69 = sbr.rel (0) target = $region25
    $region24: #{hidden1_forward.1} parent=1 // pred_region
      %70 = dma.done [#allocation3], 768
    $region25: #{hidden1_forward.1} parent=1 // pred_fallthru
      _
    // Predicated region
    $region26: #{hidden1_forward.1} parent=1 // pred_check
      _
    $region27: #{hidden1_forward.1} parent=1 // pred_check_branch
      %72 = sbr.rel (0) target = $region29
    $region28: #{hidden1_forward.1} parent=1 // pred_region
      %73 = dma.done [#allocation6], 6144
    $region29: #{hidden1_forward.1} parent=1 // pred_fallthru
      _
    // Predicated region
    $region30: #{hidden1_forward.1} parent=1 // pred_check
      _
    $region31: #{hidden1_forward.1} parent=1 // pred_check_branch
      %75 = sbr.rel (0) target = $region33
    $region32: #{hidden1_forward.1} parent=1 // pred_region
      %76 = dma.done [#allocation6], 16
    $region33: #{hidden1_forward.1} parent=1 // pred_fallthru
      _
    // Predicated region
    $region34: #{hidden1_forward.1} parent=1 // pred_check
      _
    $region35: #{hidden1_forward.1} parent=1 // pred_check_branch
      %78 = sbr.rel (0) target = $region37
    $region36: #{hidden1_forward.1} parent=1 // pred_region
      %79 = dma.done [#allocation9], 4096
    $region37: #{hidden1_forward.1} parent=1 // pred_fallthru
      _
    // Predicated region
    $region38: #{hidden1_forward.1} parent=1 // pred_check
      _
    $region39: #{hidden1_forward.1} parent=1 // pred_check_branch
      %81 = sbr.rel (0) target = $region41
    $region40: #{hidden1_forward.1} parent=1 // pred_region
      %82 = dma.done [#allocation9], 64
    $region41: #{hidden1_forward.1} parent=1 // pred_fallthru
      _
    %v84 = vld [vmem:[#allocation2] sm:$0xff]
    %v85 = vld [vmem:[#allocation2 + $0x8] sm:$0xff]
    %v86 = vld [vmem:[#allocation2 + $0x10] sm:$0xff]
    %v87 = vld [vmem:[#allocation2 + $0x18] sm:$0xff]
    %v88 = vld [vmem:[#allocation2 + $0x20] sm:$0xff]
    %v89 = vld [vmem:[#allocation2 + $0x28] sm:$0xff]
    %v90 = vpack.c.bf16 %v84, %v84
    %v91 = vpack.c.bf16 %v85, %v85
    %v92 = vpack.c.bf16 %v86, %v86
    %v93 = vpack.c.bf16 %v87, %v87
    %v94 = vpack.c.bf16 %v88, %v88
    %v95 = vpack.c.bf16 %v89, %v89
    %v96 = vld [vmem:[#allocation5] sm:$0xf]
    %v97 = vld [vmem:[#allocation5 + $0x4] sm:$0xf]
    %v98 = vld [vmem:[#allocation5 + $0x8] sm:$0xf]
    %v99 = vld [vmem:[#allocation5 + $0xc] sm:$0xf]
    %v100 = vld [vmem:[#allocation5 + $0x10] sm:$0xf]
    %v101 = vld [vmem:[#allocation5 + $0x14] sm:$0xf]
    %v102 = vld [vmem:[#allocation5 + $0x18] sm:$0xf]
    %v103 = vld [vmem:[#allocation5 + $0x1c] sm:$0xf]
    %v104 = vld [vmem:[#allocation5 + $0x20] sm:$0xf]
    %v105 = vld [vmem:[#allocation5 + $0x24] sm:$0xf]
    %v106 = vld [vmem:[#allocation5 + $0x28] sm:$0xf]
    %v107 = vld [vmem:[#allocation5 + $0x2c] sm:$0xf]
    %v108 = vld [vmem:[#allocation5 + $0x30] sm:$0xf]
    %v109 = vld [vmem:[#allocation5 + $0x34] sm:$0xf]
    %v110 = vld [vmem:[#allocation5 + $0x38] sm:$0xf]
    %v111 = vld [vmem:[#allocation5 + $0x3c] sm:$0xf]
    %v112 = vld [vmem:[#allocation5 + $0x40] sm:$0xf]
    %v113 = vld [vmem:[#allocation5 + $0x44] sm:$0xf]
    %v114 = vld [vmem:[#allocation5 + $0x48] sm:$0xf]
    %v115 = vld [vmem:[#allocation5 + $0x4c] sm:$0xf]
    %v116 = vld [vmem:[#allocation5 + $0x50] sm:$0xf]
    %v117 = vld [vmem:[#allocation5 + $0x54] sm:$0xf]
    %v118 = vld [vmem:[#allocation5 + $0x58] sm:$0xf]
    %v119 = vld [vmem:[#allocation5 + $0x5c] sm:$0xf]
    %v120 = vld [vmem:[#allocation5 + $0x60] sm:$0xf]
    %v121 = vld [vmem:[#allocation5 + $0x64] sm:$0xf]
    %v122 = vld [vmem:[#allocation5 + $0x68] sm:$0xf]
    %v123 = vld [vmem:[#allocation5 + $0x6c] sm:$0xf]
    %v124 = vld [vmem:[#allocation5 + $0x70] sm:$0xf]
    %v125 = vld [vmem:[#allocation5 + $0x74] sm:$0xf]
    %v126 = vld [vmem:[#allocation5 + $0x78] sm:$0xf]
    %v127 = vld [vmem:[#allocation5 + $0x7c] sm:$0xf]
    %v128 = vld [vmem:[#allocation5 + $0x80] sm:$0xf]
    %v129 = vld [vmem:[#allocation5 + $0x84] sm:$0xf]
    %v130 = vld [vmem:[#allocation5 + $0x88] sm:$0xf]
    %v131 = vld [vmem:[#allocation5 + $0x8c] sm:$0xf]
    %v132 = vld [vmem:[#allocation5 + $0x90] sm:$0xf]
    %v133 = vld [vmem:[#allocation5 + $0x94] sm:$0xf]
    %v134 = vld [vmem:[#allocation5 + $0x98] sm:$0xf]
    %v135 = vld [vmem:[#allocation5 + $0x9c] sm:$0xf]
    %v136 = vld [vmem:[#allocation5 + $0xa0] sm:$0xf]
    %v137 = vld [vmem:[#allocation5 + $0xa4] sm:$0xf]
    %v138 = vld [vmem:[#allocation5 + $0xa8] sm:$0xf]
    %v139 = vld [vmem:[#allocation5 + $0xac] sm:$0xf]
    %v140 = vld [vmem:[#allocation5 + $0xb0] sm:$0xf]
    %v141 = vld [vmem:[#allocation5 + $0xb4] sm:$0xf]
    %v142 = vld [vmem:[#allocation5 + $0xb8] sm:$0xf]
    %v143 = vld [vmem:[#allocation5 + $0xbc] sm:$0xf]
    %v144 = vld [vmem:[#allocation5 + $0xc0] sm:$0xf]
    %v145 = vld [vmem:[#allocation5 + $0xc4] sm:$0xf]
    %v146 = vld [vmem:[#allocation5 + $0xc8] sm:$0xf]
    %v147 = vld [vmem:[#allocation5 + $0xcc] sm:$0xf]
    %v148 = vld [vmem:[#allocation5 + $0xd0] sm:$0xf]
    %v149 = vld [vmem:[#allocation5 + $0xd4] sm:$0xf]
    %v150 = vld [vmem:[#allocation5 + $0xd8] sm:$0xf]
    %v151 = vld [vmem:[#allocation5 + $0xdc] sm:$0xf]
    %v152 = vld [vmem:[#allocation5 + $0xe0] sm:$0xf]
    %v153 = vld [vmem:[#allocation5 + $0xe4] sm:$0xf]
    %v154 = vld [vmem:[#allocation5 + $0xe8] sm:$0xf]
    %v155 = vld [vmem:[#allocation5 + $0xec] sm:$0xf]
    %v156 = vld [vmem:[#allocation5 + $0xf0] sm:$0xf]
    %v157 = vld [vmem:[#allocation5 + $0xf4] sm:$0xf]
    %v158 = vld [vmem:[#allocation5 + $0xf8] sm:$0xf]
    %v159 = vld [vmem:[#allocation5 + $0xfc] sm:$0xf]
    %v160 = vld [vmem:[#allocation5 + $0x100] sm:$0xf]
    %v161 = vld [vmem:[#allocation5 + $0x104] sm:$0xf]
    %v162 = vld [vmem:[#allocation5 + $0x108] sm:$0xf]
    %v163 = vld [vmem:[#allocation5 + $0x10c] sm:$0xf]
    %v164 = vld [vmem:[#allocation5 + $0x110] sm:$0xf]
    %v165 = vld [vmem:[#allocation5 + $0x114] sm:$0xf]
    %v166 = vld [vmem:[#allocation5 + $0x118] sm:$0xf]
    %v167 = vld [vmem:[#allocation5 + $0x11c] sm:$0xf]
    %v168 = vld [vmem:[#allocation5 + $0x120] sm:$0xf]
    %v169 = vld [vmem:[#allocation5 + $0x124] sm:$0xf]
    %v170 = vld [vmem:[#allocation5 + $0x128] sm:$0xf]
    %v171 = vld [vmem:[#allocation5 + $0x12c] sm:$0xf]
    %v172 = vld [vmem:[#allocation5 + $0x130] sm:$0xf]
    %v173 = vld [vmem:[#allocation5 + $0x134] sm:$0xf]
    %v174 = vld [vmem:[#allocation5 + $0x138] sm:$0xf]
    %v175 = vld [vmem:[#allocation5 + $0x13c] sm:$0xf]
    %v176 = vld [vmem:[#allocation5 + $0x140] sm:$0xf]
    %v177 = vld [vmem:[#allocation5 + $0x144] sm:$0xf]
    %v178 = vld [vmem:[#allocation5 + $0x148] sm:$0xf]
    %v179 = vld [vmem:[#allocation5 + $0x14c] sm:$0xf]
    %v180 = vld [vmem:[#allocation5 + $0x150] sm:$0xf]
    %v181 = vld [vmem:[#allocation5 + $0x154] sm:$0xf]
    %v182 = vld [vmem:[#allocation5 + $0x158] sm:$0xf]
    %v183 = vld [vmem:[#allocation5 + $0x15c] sm:$0xf]
    %v184 = vld [vmem:[#allocation5 + $0x160] sm:$0xf]
    %v185 = vld [vmem:[#allocation5 + $0x164] sm:$0xf]
    %v186 = vld [vmem:[#allocation5 + $0x168] sm:$0xf]
    %v187 = vld [vmem:[#allocation5 + $0x16c] sm:$0xf]
    %v188 = vld [vmem:[#allocation5 + $0x170] sm:$0xf]
    %v189 = vld [vmem:[#allocation5 + $0x174] sm:$0xf]
    %v190 = vld [vmem:[#allocation5 + $0x178] sm:$0xf]
    %v191 = vld [vmem:[#allocation5 + $0x17c] sm:$0xf]
    %v192 = vld [vmem:[#allocation7] sm:$0x1]
    %v194 = vlaneseq
    %v195 = vshrl.u32 %v194, 7
    %v196 = vsub.s32 0, %v195
    %v197 = vrot.slane %v192, %v196
    %v295 = vunpack.c.l.b16 %v96
    %v296 = vunpack.c.l.b16 %v97
    %v297 = vunpack.c.l.b16 %v98
    %v298 = vunpack.c.l.b16 %v99
    %v299 = vunpack.c.l.b16 %v100
    %v300 = vunpack.c.l.b16 %v101
    %v301 = vunpack.c.l.b16 %v102
    %v302 = vunpack.c.l.b16 %v103
    %v303 = vunpack.c.l.b16 %v104
    %v304 = vunpack.c.l.b16 %v105
    %v305 = vunpack.c.l.b16 %v106
    %v306 = vunpack.c.l.b16 %v107
    %v307 = vunpack.c.l.b16 %v108
    %v308 = vunpack.c.l.b16 %v109
    %v309 = vunpack.c.l.b16 %v110
    %v310 = vunpack.c.l.b16 %v111
    %v311 = vunpack.c.l.b16 %v112
    %v312 = vunpack.c.l.b16 %v113
    %v313 = vunpack.c.l.b16 %v114
    %v314 = vunpack.c.l.b16 %v115
    %v315 = vunpack.c.l.b16 %v116
    %v316 = vunpack.c.l.b16 %v117
    %v317 = vunpack.c.l.b16 %v118
    %v318 = vunpack.c.l.b16 %v119
    %v319 = vunpack.c.l.b16 %v120
    %v320 = vunpack.c.l.b16 %v121
    %v321 = vunpack.c.l.b16 %v122
    %v322 = vunpack.c.l.b16 %v123
    %v323 = vunpack.c.l.b16 %v124
    %v324 = vunpack.c.l.b16 %v125
    %v325 = vunpack.c.l.b16 %v126
    %v326 = vunpack.c.l.b16 %v127
    %v327 = vunpack.c.l.b16 %v128
    %v328 = vunpack.c.l.b16 %v129
    %v329 = vunpack.c.l.b16 %v130
    %v330 = vunpack.c.l.b16 %v131
    %v331 = vunpack.c.l.b16 %v132
    %v332 = vunpack.c.l.b16 %v133
    %v333 = vunpack.c.l.b16 %v134
    %v334 = vunpack.c.l.b16 %v135
    %v335 = vunpack.c.l.b16 %v136
    %v336 = vunpack.c.l.b16 %v137
    %v337 = vunpack.c.l.b16 %v138
    %v338 = vunpack.c.l.b16 %v139
    %v339 = vunpack.c.l.b16 %v140
    %v340 = vunpack.c.l.b16 %v141
    %v341 = vunpack.c.l.b16 %v142
    %v342 = vunpack.c.l.b16 %v143
    %v343 = vunpack.c.l.b16 %v144
    %v344 = vunpack.c.l.b16 %v145
    %v345 = vunpack.c.l.b16 %v146
    %v346 = vunpack.c.l.b16 %v147
    %v347 = vunpack.c.l.b16 %v148
    %v348 = vunpack.c.l.b16 %v149
    %v349 = vunpack.c.l.b16 %v150
    %v350 = vunpack.c.l.b16 %v151
    %v351 = vunpack.c.l.b16 %v152
    %v352 = vunpack.c.l.b16 %v153
    %v353 = vunpack.c.l.b16 %v154
    %v354 = vunpack.c.l.b16 %v155
    %v355 = vunpack.c.l.b16 %v156
    %v356 = vunpack.c.l.b16 %v157
    %v357 = vunpack.c.l.b16 %v158
    %v358 = vunpack.c.l.b16 %v159
    %v359 = vunpack.c.l.b16 %v160
    %v360 = vunpack.c.l.b16 %v161
    %v361 = vunpack.c.l.b16 %v162
    %v362 = vunpack.c.l.b16 %v163
    %v363 = vunpack.c.l.b16 %v164
    %v364 = vunpack.c.l.b16 %v165
    %v365 = vunpack.c.l.b16 %v166
    %v366 = vunpack.c.l.b16 %v167
    %v367 = vunpack.c.l.b16 %v168
    %v368 = vunpack.c.l.b16 %v169
    %v369 = vunpack.c.l.b16 %v170
    %v370 = vunpack.c.l.b16 %v171
    %v371 = vunpack.c.l.b16 %v172
    %v372 = vunpack.c.l.b16 %v173
    %v373 = vunpack.c.l.b16 %v174
    %v374 = vunpack.c.l.b16 %v175
    %v375 = vunpack.c.l.b16 %v176
    %v376 = vunpack.c.l.b16 %v177
    %v377 = vunpack.c.l.b16 %v178
    %v378 = vunpack.c.l.b16 %v179
    %v379 = vunpack.c.l.b16 %v180
    %v380 = vunpack.c.l.b16 %v181
    %v381 = vunpack.c.l.b16 %v182
    %v382 = vunpack.c.l.b16 %v183
    %v383 = vunpack.c.l.b16 %v184
    %v384 = vunpack.c.l.b16 %v185
    %v385 = vunpack.c.l.b16 %v186
    %v386 = vunpack.c.l.b16 %v187
    %v387 = vunpack.c.l.b16 %v188
    %v388 = vunpack.c.l.b16 %v189
    %v389 = vunpack.c.l.b16 %v190
    %v390 = vunpack.c.l.b16 %v191
    %v391 = vpack.c.b16 %v296, %v295
    %v392 = vpack.c.b16 %v298, %v297
    %v393 = vpack.c.b16 %v300, %v299
    %v394 = vpack.c.b16 %v302, %v301
    %v395 = vpack.c.b16 %v304, %v303
    %v396 = vpack.c.b16 %v306, %v305
    %v397 = vpack.c.b16 %v308, %v307
    %v398 = vpack.c.b16 %v310, %v309
    %v399 = vpack.c.b16 %v312, %v311
    %v400 = vpack.c.b16 %v314, %v313
    %v401 = vpack.c.b16 %v316, %v315
    %v402 = vpack.c.b16 %v318, %v317
    %v403 = vpack.c.b16 %v320, %v319
    %v404 = vpack.c.b16 %v322, %v321
    %v405 = vpack.c.b16 %v324, %v323
    %v406 = vpack.c.b16 %v326, %v325
    %v407 = vpack.c.b16 %v328, %v327
    %v408 = vpack.c.b16 %v330, %v329
    %v409 = vpack.c.b16 %v332, %v331
    %v410 = vpack.c.b16 %v334, %v333
    %v411 = vpack.c.b16 %v336, %v335
    %v412 = vpack.c.b16 %v338, %v337
    %v413 = vpack.c.b16 %v340, %v339
    %v414 = vpack.c.b16 %v342, %v341
    %v415 = vpack.c.b16 %v344, %v343
    %v416 = vpack.c.b16 %v346, %v345
    %v417 = vpack.c.b16 %v348, %v347
    %v418 = vpack.c.b16 %v350, %v349
    %v419 = vpack.c.b16 %v352, %v351
    %v420 = vpack.c.b16 %v354, %v353
    %v421 = vpack.c.b16 %v356, %v355
    %v422 = vpack.c.b16 %v358, %v357
    %v423 = vpack.c.b16 %v360, %v359
    %v424 = vpack.c.b16 %v362, %v361
    %v425 = vpack.c.b16 %v364, %v363
    %v426 = vpack.c.b16 %v366, %v365
    %v427 = vpack.c.b16 %v368, %v367
    %v428 = vpack.c.b16 %v370, %v369
    %v429 = vpack.c.b16 %v372, %v371
    %v430 = vpack.c.b16 %v374, %v373
    %v431 = vpack.c.b16 %v376, %v375
    %v432 = vpack.c.b16 %v378, %v377
    %v433 = vpack.c.b16 %v380, %v379
    %v434 = vpack.c.b16 %v382, %v381
    %v435 = vpack.c.b16 %v384, %v383
    %v436 = vpack.c.b16 %v386, %v385
    %v437 = vpack.c.b16 %v388, %v387
    %v438 = vpack.c.b16 %v390, %v389
    %487 = vmatprep.subr.bf16.mxu0 0
    %488 = vmatpush1.bf16.msra.mxu0 %v391
    %489 = vmatprep.subr.bf16.mxu0 0
    %490 = vmatpush1.bf16.msra.mxu0 %v392
    %491 = vmatprep.subr.bf16.mxu0 0
    %492 = vmatpush1.bf16.msra.mxu0 %v393
    %493 = vmatprep.subr.bf16.mxu0 0
    %494 = vmatpush1.bf16.msra.mxu0 %v394
    %495 = vmatprep.subr.bf16.mxu0 0
    %496 = vmatpush1.bf16.msra.mxu0 %v395
    %497 = vmatprep.subr.bf16.mxu0 0
    %498 = vmatpush1.bf16.msra.mxu0 %v396
    %499 = vmatprep.subr.bf16.mxu0 0
    %500 = vmatpush1.bf16.msra.mxu0 %v397
    %501 = vmatprep.subr.bf16.mxu0 0
    %502 = vmatpush1.bf16.msra.mxu0 %v398
    %503 = vmatprep.subr.bf16.mxu0 0
    %504 = vmatpush1.bf16.msra.mxu0 %v399
    %505 = vmatprep.subr.bf16.mxu0 0
    %506 = vmatpush1.bf16.msra.mxu0 %v400
    %507 = vmatprep.subr.bf16.mxu0 0
    %508 = vmatpush1.bf16.msra.mxu0 %v401
    %509 = vmatprep.subr.bf16.mxu0 0
    %510 = vmatpush1.bf16.msra.mxu0 %v402
    %511 = vmatprep.subr.bf16.mxu0 0
    %512 = vmatpush1.bf16.msra.mxu0 %v403
    %513 = vmatprep.subr.bf16.mxu0 0
    %514 = vmatpush1.bf16.msra.mxu0 %v404
    %515 = vmatprep.subr.bf16.mxu0 0
    %516 = vmatpush1.bf16.msra.mxu0 %v405
    %517 = vmatprep.subr.bf16.mxu0 0
    %518 = vmatpush1.bf16.msra.mxu0 %v406
    %519 = vmatprep.mubr.bf16.mxu0 %v91
    %520 = vmatmul.mubr.bf16.gmra.mrb[0].mxu0 %v90
    %v521 = vpop.f32.mrb[0].mxu0
    %v522 = vadd.f32 %v197, %v521
    %v523 = vpop.f32.mrb[0].mxu0
    %v524 = vpop.f32.mrb[0].mxu0
    %v525 = vpop.f32.mrb[0].mxu0
    %526 = vdwg.mxu0
    %527 = vmatprep.subr.bf16.mxu0 0
    %528 = vmatpush1.bf16.msra.mxu0 %v407
    %529 = vmatprep.subr.bf16.mxu0 0
    %530 = vmatpush1.bf16.msra.mxu0 %v408
    %531 = vmatprep.subr.bf16.mxu0 0
    %532 = vmatpush1.bf16.msra.mxu0 %v409
    %533 = vmatprep.subr.bf16.mxu0 0
    %534 = vmatpush1.bf16.msra.mxu0 %v410
    %535 = vmatprep.subr.bf16.mxu0 0
    %536 = vmatpush1.bf16.msra.mxu0 %v411
    %537 = vmatprep.subr.bf16.mxu0 0
    %538 = vmatpush1.bf16.msra.mxu0 %v412
    %539 = vmatprep.subr.bf16.mxu0 0
    %540 = vmatpush1.bf16.msra.mxu0 %v413
    %541 = vmatprep.subr.bf16.mxu0 0
    %542 = vmatpush1.bf16.msra.mxu0 %v414
    %543 = vmatprep.subr.bf16.mxu0 0
    %544 = vmatpush1.bf16.msra.mxu0 %v415
    %545 = vmatprep.subr.bf16.mxu0 0
    %546 = vmatpush1.bf16.msra.mxu0 %v416
    %547 = vmatprep.subr.bf16.mxu0 0
    %548 = vmatpush1.bf16.msra.mxu0 %v417
    %549 = vmatprep.subr.bf16.mxu0 0
    %550 = vmatpush1.bf16.msra.mxu0 %v418
    %551 = vmatprep.subr.bf16.mxu0 0
    %552 = vmatpush1.bf16.msra.mxu0 %v419
    %553 = vmatprep.subr.bf16.mxu0 0
    %554 = vmatpush1.bf16.msra.mxu0 %v420
    %555 = vmatprep.subr.bf16.mxu0 0
    %556 = vmatpush1.bf16.msra.mxu0 %v421
    %557 = vmatprep.subr.bf16.mxu0 0
    %558 = vmatpush1.bf16.msra.mxu0 %v422
    %559 = vmatprep.mubr.bf16.mxu0 %v93
    %560 = vmatmul.mubr.bf16.gmra.mrb[0].mxu0 %v92
    %v561 = vpop.f32.mrb[0].mxu0
    %v562 = vadd.f32 %v522, %v561
    %v563 = vpop.f32.mrb[0].mxu0
    %v564 = vpop.f32.mrb[0].mxu0
    %v565 = vpop.f32.mrb[0].mxu0
    %566 = vdwg.mxu0
    %567 = vmatprep.subr.bf16.mxu0 0
    %568 = vmatpush1.bf16.msra.mxu0 %v423
    %569 = vmatprep.subr.bf16.mxu0 0
    %570 = vmatpush1.bf16.msra.mxu0 %v424
    %571 = vmatprep.subr.bf16.mxu0 0
    %572 = vmatpush1.bf16.msra.mxu0 %v425
    %573 = vmatprep.subr.bf16.mxu0 0
    %574 = vmatpush1.bf16.msra.mxu0 %v426
    %575 = vmatprep.subr.bf16.mxu0 0
    %576 = vmatpush1.bf16.msra.mxu0 %v427
    %577 = vmatprep.subr.bf16.mxu0 0
    %578 = vmatpush1.bf16.msra.mxu0 %v428
    %579 = vmatprep.subr.bf16.mxu0 0
    %580 = vmatpush1.bf16.msra.mxu0 %v429
    %581 = vmatprep.subr.bf16.mxu0 0
    %582 = vmatpush1.bf16.msra.mxu0 %v430
    %583 = vmatprep.subr.bf16.mxu0 0
    %584 = vmatpush1.bf16.msra.mxu0 %v431
    %585 = vmatprep.subr.bf16.mxu0 0
    %586 = vmatpush1.bf16.msra.mxu0 %v432
    %587 = vmatprep.subr.bf16.mxu0 0
    %588 = vmatpush1.bf16.msra.mxu0 %v433
    %589 = vmatprep.subr.bf16.mxu0 0
    %590 = vmatpush1.bf16.msra.mxu0 %v434
    %591 = vmatprep.subr.bf16.mxu0 0
    %592 = vmatpush1.bf16.msra.mxu0 %v435
    %593 = vmatprep.subr.bf16.mxu0 0
    %594 = vmatpush1.bf16.msra.mxu0 %v436
    %595 = vmatprep.subr.bf16.mxu0 0
    %596 = vmatpush1.bf16.msra.mxu0 %v437
    %597 = vmatprep.subr.bf16.mxu0 0
    %598 = vmatpush1.bf16.msra.mxu0 %v438
    %599 = vmatprep.mubr.bf16.mxu0 %v95
    %600 = vmatmul.mubr.bf16.gmra.mrb[0].mxu0 %v94
    %v601 = vpop.f32.mrb[0].mxu0
    %v602 = vadd.f32 %v562, %v601
    %v603 = vpop.f32.mrb[0].mxu0
    %v604 = vpop.f32.mrb[0].mxu0
    %v605 = vpop.f32.mrb[0].mxu0
    %606 = vdwg.mxu0
    %v607 = vmax.f32 %v602, 0.0
    %v608 = vpack.c.bf16 %v607, %v607
    %v609 = vld [vmem:[#allocation8] sm:$0xff]
    %v610 = vld [vmem:[#allocation8 + $0x8] sm:$0xff]
    %v611 = vld [vmem:[#allocation8 + $0x10] sm:$0xff]
    %v612 = vld [vmem:[#allocation8 + $0x18] sm:$0xff]
    %v613 = vld [vmem:[#allocation8 + $0x20] sm:$0xff]
    %v614 = vld [vmem:[#allocation8 + $0x28] sm:$0xff]
    %v615 = vld [vmem:[#allocation8 + $0x30] sm:$0xff]
    %v616 = vld [vmem:[#allocation8 + $0x38] sm:$0xff]
    %v617 = vld [vmem:[#allocation8 + $0x40] sm:$0xff]
    %v618 = vld [vmem:[#allocation8 + $0x48] sm:$0xff]
    %v619 = vld [vmem:[#allocation8 + $0x50] sm:$0xff]
    %v620 = vld [vmem:[#allocation8 + $0x58] sm:$0xff]
    %v621 = vld [vmem:[#allocation8 + $0x60] sm:$0xff]
    %v622 = vld [vmem:[#allocation8 + $0x68] sm:$0xff]
    %v623 = vld [vmem:[#allocation8 + $0x70] sm:$0xff]
    %v624 = vld [vmem:[#allocation8 + $0x78] sm:$0xff]
    %v625 = vld [vmem:[#allocation8 + $0x80] sm:$0xff]
    %v626 = vld [vmem:[#allocation8 + $0x88] sm:$0xff]
    %v627 = vld [vmem:[#allocation8 + $0x90] sm:$0xff]
    %v628 = vld [vmem:[#allocation8 + $0x98] sm:$0xff]
    %v629 = vld [vmem:[#allocation8 + $0xa0] sm:$0xff]
    %v630 = vld [vmem:[#allocation8 + $0xa8] sm:$0xff]
    %v631 = vld [vmem:[#allocation8 + $0xb0] sm:$0xff]
    %v632 = vld [vmem:[#allocation8 + $0xb8] sm:$0xff]
    %v633 = vld [vmem:[#allocation8 + $0xc0] sm:$0xff]
    %v634 = vld [vmem:[#allocation8 + $0xc8] sm:$0xff]
    %v635 = vld [vmem:[#allocation8 + $0xd0] sm:$0xff]
    %v636 = vld [vmem:[#allocation8 + $0xd8] sm:$0xff]
    %v637 = vld [vmem:[#allocation8 + $0xe0] sm:$0xff]
    %v638 = vld [vmem:[#allocation8 + $0xe8] sm:$0xff]
    %v639 = vld [vmem:[#allocation8 + $0xf0] sm:$0xff]
    %v640 = vld [vmem:[#allocation8 + $0xf8] sm:$0xff]
    %v641 = vld [vmem:[#allocation10] sm:$0xf]
    %v643 = vlaneseq
    %v644 = vshrl.u32 %v643, 7
    %v645 = vsub.s32 0, %v644
    %v646 = vrot.slane %v641, %v645
    %v647 = vlaneseq
    %v648 = vshrl.u32 %v647, 7
    %v649 = vsub.s32 1, %v648
    %v650 = vrot.slane %v641, %v649
    %v651 = vlaneseq
    %v652 = vshrl.u32 %v651, 7
    %v653 = vsub.s32 2, %v652
    %v654 = vrot.slane %v641, %v653
    %v655 = vlaneseq
    %v656 = vshrl.u32 %v655, 7
    %v657 = vsub.s32 3, %v656
    %v658 = vrot.slane %v641, %v657
    %v695 = vunpack.c.l.b16 %v609
    %v696 = vunpack.c.h.b16 %v609
    %v697 = vunpack.c.l.b16 %v610
    %v698 = vunpack.c.h.b16 %v610
    %v699 = vunpack.c.l.b16 %v611
    %v700 = vunpack.c.h.b16 %v611
    %v701 = vunpack.c.l.b16 %v612
    %v702 = vunpack.c.h.b16 %v612
    %v703 = vunpack.c.l.b16 %v613
    %v704 = vunpack.c.h.b16 %v613
    %v705 = vunpack.c.l.b16 %v614
    %v706 = vunpack.c.h.b16 %v614
    %v707 = vunpack.c.l.b16 %v615
    %v708 = vunpack.c.h.b16 %v615
    %v709 = vunpack.c.l.b16 %v616
    %v710 = vunpack.c.h.b16 %v616
    %v711 = vunpack.c.l.b16 %v617
    %v712 = vunpack.c.h.b16 %v617
    %v713 = vunpack.c.l.b16 %v618
    %v714 = vunpack.c.h.b16 %v618
    %v715 = vunpack.c.l.b16 %v619
    %v716 = vunpack.c.h.b16 %v619
    %v717 = vunpack.c.l.b16 %v620
    %v718 = vunpack.c.h.b16 %v620
    %v719 = vunpack.c.l.b16 %v621
    %v720 = vunpack.c.h.b16 %v621
    %v721 = vunpack.c.l.b16 %v622
    %v722 = vunpack.c.h.b16 %v622
    %v723 = vunpack.c.l.b16 %v623
    %v724 = vunpack.c.h.b16 %v623
    %v725 = vunpack.c.l.b16 %v624
    %v726 = vunpack.c.h.b16 %v624
    %v727 = vunpack.c.l.b16 %v625
    %v728 = vunpack.c.h.b16 %v625
    %v729 = vunpack.c.l.b16 %v626
    %v730 = vunpack.c.h.b16 %v626
    %v731 = vunpack.c.l.b16 %v627
    %v732 = vunpack.c.h.b16 %v627
    %v733 = vunpack.c.l.b16 %v628
    %v734 = vunpack.c.h.b16 %v628
    %v735 = vunpack.c.l.b16 %v629
    %v736 = vunpack.c.h.b16 %v629
    %v737 = vunpack.c.l.b16 %v630
    %v738 = vunpack.c.h.b16 %v630
    %v739 = vunpack.c.l.b16 %v631
    %v740 = vunpack.c.h.b16 %v631
    %v741 = vunpack.c.l.b16 %v632
    %v742 = vunpack.c.h.b16 %v632
    %v743 = vunpack.c.l.b16 %v633
    %v744 = vunpack.c.h.b16 %v633
    %v745 = vunpack.c.l.b16 %v634
    %v746 = vunpack.c.h.b16 %v634
    %v747 = vunpack.c.l.b16 %v635
    %v748 = vunpack.c.h.b16 %v635
    %v749 = vunpack.c.l.b16 %v636
    %v750 = vunpack.c.h.b16 %v636
    %v751 = vunpack.c.l.b16 %v637
    %v752 = vunpack.c.h.b16 %v637
    %v753 = vunpack.c.l.b16 %v638
    %v754 = vunpack.c.h.b16 %v638
    %v755 = vunpack.c.l.b16 %v639
    %v756 = vunpack.c.h.b16 %v639
    %v757 = vunpack.c.l.b16 %v640
    %v758 = vunpack.c.h.b16 %v640
    %v759 = vpack.c.b16 %v699, %v695
    %v760 = vpack.c.b16 %v700, %v696
    %v761 = vpack.c.b16 %v701, %v697
    %v762 = vpack.c.b16 %v702, %v698
    %v763 = vpack.c.b16 %v707, %v703
    %v764 = vpack.c.b16 %v708, %v704
    %v765 = vpack.c.b16 %v709, %v705
    %v766 = vpack.c.b16 %v710, %v706
    %v767 = vpack.c.b16 %v715, %v711
    %v768 = vpack.c.b16 %v716, %v712
    %v769 = vpack.c.b16 %v717, %v713
    %v770 = vpack.c.b16 %v718, %v714
    %v771 = vpack.c.b16 %v723, %v719
    %v772 = vpack.c.b16 %v724, %v720
    %v773 = vpack.c.b16 %v725, %v721
    %v774 = vpack.c.b16 %v726, %v722
    %v775 = vpack.c.b16 %v731, %v727
    %v776 = vpack.c.b16 %v732, %v728
    %v777 = vpack.c.b16 %v733, %v729
    %v778 = vpack.c.b16 %v734, %v730
    %v779 = vpack.c.b16 %v739, %v735
    %v780 = vpack.c.b16 %v740, %v736
    %v781 = vpack.c.b16 %v741, %v737
    %v782 = vpack.c.b16 %v742, %v738
    %v783 = vpack.c.b16 %v747, %v743
    %v784 = vpack.c.b16 %v748, %v744
    %v785 = vpack.c.b16 %v749, %v745
    %v786 = vpack.c.b16 %v750, %v746
    %v787 = vpack.c.b16 %v755, %v751
    %v788 = vpack.c.b16 %v756, %v752
    %v789 = vpack.c.b16 %v757, %v753
    %v790 = vpack.c.b16 %v758, %v754
    %823 = vmatprep.subr.bf16.mxu0 %v760
    %824 = vmatpush1.bf16.msra.mxu0 %v759
    %825 = vmatprep.subr.bf16.mxu0 %v764
    %826 = vmatpush1.bf16.msra.mxu0 %v763
    %827 = vmatprep.subr.bf16.mxu0 %v768
    %828 = vmatpush1.bf16.msra.mxu0 %v767
    %829 = vmatprep.subr.bf16.mxu0 %v772
    %830 = vmatpush1.bf16.msra.mxu0 %v771
    %831 = vmatprep.subr.bf16.mxu0 %v776
    %832 = vmatpush1.bf16.msra.mxu0 %v775
    %833 = vmatprep.subr.bf16.mxu0 %v780
    %834 = vmatpush1.bf16.msra.mxu0 %v779
    %835 = vmatprep.subr.bf16.mxu0 %v784
    %836 = vmatpush1.bf16.msra.mxu0 %v783
    %837 = vmatprep.subr.bf16.mxu0 %v788
    %838 = vmatpush1.bf16.msra.mxu0 %v787
    %839 = vmatprep.subr.bf16.mxu0 0
    %840 = vmatpush1.bf16.msra.mxu0 0
    %841 = vmatprep.subr.bf16.mxu0 0
    %842 = vmatpush1.bf16.msra.mxu0 0
    %843 = vmatprep.subr.bf16.mxu0 0
    %844 = vmatpush1.bf16.msra.mxu0 0
    %845 = vmatprep.subr.bf16.mxu0 0
    %846 = vmatpush1.bf16.msra.mxu0 0
    %847 = vmatprep.subr.bf16.mxu0 0
    %848 = vmatpush1.bf16.msra.mxu0 0
    %849 = vmatprep.subr.bf16.mxu0 0
    %850 = vmatpush1.bf16.msra.mxu0 0
    %851 = vmatprep.subr.bf16.mxu0 0
    %852 = vmatpush1.bf16.msra.mxu0 0
    %853 = vmatprep.subr.bf16.mxu0 0
    %854 = vmatpush1.bf16.msra.mxu0 0
    %855 = vmatprep.mubr.bf16.mxu0 0
    %856 = vmatmul.mubr.bf16.gmra.mrb[0].mxu0 %v608
    %v857 = vpop.f32.mrb[0].mxu0
    %v858 = vadd.f32 %v646, %v857
    %v859 = vpop.f32.mrb[0].mxu0
    %v860 = vadd.f32 %v650, %v859
    %v861 = vpop.f32.mrb[0].mxu0
    %v862 = vpop.f32.mrb[0].mxu0
    %863 = vdwg.mxu0
    %864 = vmatprep.subr.bf16.mxu0 %v762
    %865 = vmatpush1.bf16.msra.mxu0 %v761
    %866 = vmatprep.subr.bf16.mxu0 %v766
    %867 = vmatpush1.bf16.msra.mxu0 %v765
    %868 = vmatprep.subr.bf16.mxu0 %v770
    %869 = vmatpush1.bf16.msra.mxu0 %v769
    %870 = vmatprep.subr.bf16.mxu0 %v774
    %871 = vmatpush1.bf16.msra.mxu0 %v773
    %872 = vmatprep.subr.bf16.mxu0 %v778
    %873 = vmatpush1.bf16.msra.mxu0 %v777
    %874 = vmatprep.subr.bf16.mxu0 %v782
    %875 = vmatpush1.bf16.msra.mxu0 %v781
    %876 = vmatprep.subr.bf16.mxu0 %v786
    %877 = vmatpush1.bf16.msra.mxu0 %v785
    %878 = vmatprep.subr.bf16.mxu0 %v790
    %879 = vmatpush1.bf16.msra.mxu0 %v789
    %880 = vmatprep.subr.bf16.mxu0 0
    %881 = vmatpush1.bf16.msra.mxu0 0
    %882 = vmatprep.subr.bf16.mxu0 0
    %883 = vmatpush1.bf16.msra.mxu0 0
    %884 = vmatprep.subr.bf16.mxu0 0
    %885 = vmatpush1.bf16.msra.mxu0 0
    %886 = vmatprep.subr.bf16.mxu0 0
    %887 = vmatpush1.bf16.msra.mxu0 0
    %888 = vmatprep.subr.bf16.mxu0 0
    %889 = vmatpush1.bf16.msra.mxu0 0
    %890 = vmatprep.subr.bf16.mxu0 0
    %891 = vmatpush1.bf16.msra.mxu0 0
    %892 = vmatprep.subr.bf16.mxu0 0
    %893 = vmatpush1.bf16.msra.mxu0 0
    %894 = vmatprep.subr.bf16.mxu0 0
    %895 = vmatpush1.bf16.msra.mxu0 0
    %896 = vmatprep.mubr.bf16.mxu0 0
    %897 = vmatmul.mubr.bf16.gmra.mrb[0].mxu0 %v608
    %v898 = vpop.f32.mrb[0].mxu0
    %v899 = vadd.f32 %v654, %v898
    %v900 = vpop.f32.mrb[0].mxu0
    %v901 = vadd.f32 %v658, %v900
    %v902 = vpop.f32.mrb[0].mxu0
    %v903 = vpop.f32.mrb[0].mxu0
    %904 = vdwg.mxu0
    %v905 = vmax.f32 %v858, 0.0
    %v906 = vmax.f32 %v860, 0.0
    %v907 = vmax.f32 %v899, 0.0
    %v908 = vmax.f32 %v901, 0.0
    %909 = vst [vmem:[#allocation11] sm:$0xff] %v905
    %910 = vst [vmem:[#allocation11 + $0x8] sm:$0xff] %v906
    %911 = vst [vmem:[#allocation11 + $0x10] sm:$0xff] %v907
    %912 = vst [vmem:[#allocation11 + $0x18] sm:$0xff] %v908
    // Predicated region
    $region42: #{hidden1_forward.1} parent=1 // pred_check
      _
    $region43: #{hidden1_forward.1} parent=1 // pred_check_branch
      %914 = sbr.rel (0) target = $region45
    $region44: #{hidden1_forward.1} parent=1 // pred_region
      %s916 = ssub.s32 512, 512
      %917 = vsyncadd [#allocation4], %s916
      %s919 = sshll.u32 [#allocation11], 4
      %s920 = int_to_ptr.vmem [resolvable:$true] %s919
      %922 = dma.vmem_to_hbm [thread:$0]  %s920, 512, %s5, [#allocation4]
    $region45: #{hidden1_forward.1} parent=1 // pred_fallthru
      _
    // Predicated region
    $region46: #{hidden1_forward.1} parent=1 // pred_check
      _
    $region47: #{hidden1_forward.1} parent=1 // pred_check_branch
      %924 = sbr.rel (0) target = $region49
    $region48: #{hidden1_forward.1} parent=1 // pred_region
      %925 = dma.done [#allocation4], 512
    $region49: #{hidden1_forward.1} parent=1 // pred_fallthru
      _
    %926 = vsyncpa [#allocation3], 1
    %927 = vsyncpa [#allocation6], 1
    %928 = vsyncpa [#allocation9], 1
    %929 = vsyncpa [#allocation4], 1

</llo_original>
